<compile_context>
chip_gen: v5e
topology: v5e:2x2
jax: 0.10.0
libtpu: 0.0.40
codegen_flags: <defaults>
</compile_context>

<pallas_src>
import functools

import jax
import jax.numpy as jnp
from jax.experimental import pallas as pl
from jax.experimental.pallas import tpu as pltpu


def _multitask_loss_kernel(scales_ref,          # SMEM (2,) f32: [1/Ncls, lam/Nreg]
                           logits_ref,          # VMEM (K, C)  native dtype
                           target_ref,          # VMEM (1, C)  int32
                           reg_ref,             # VMEM (8, C)  native dtype (pred rows 0-3, target rows 4-7)
                           out_ref,             # VMEM (1, 128) f32 per-core partial slab
                           *, n_valid, cols_per_core):
    c = pl.program_id(0)                              # core-split axis ("parallel")

    logits = logits_ref[...].astype(jnp.float32)      # (K, C)
    target = target_ref[...]                          # (1, C) int32
    regblk = reg_ref[...].astype(jnp.float32)         # (8, C)

    k = logits.shape[0]
    inv_ncls = scales_ref[0]
    lam_over_nreg = scales_ref[1]

    # ---- valid-lane mask (N was padded up to num_cores * cols_per_core) ----
    lane = jax.lax.broadcasted_iota(jnp.int32, (1, cols_per_core), 1)
    gcol = c * cols_per_core + lane
    valid = gcol < n_valid                                                     # (1, C) bool

    # ---- classification: per-ROI cross entropy (ROIs on lanes, classes on sublanes) ----
    # NOTE: like torch.nn.CrossEntropyLoss here, no ignore_index: every sampled ROI (incl. the
    # background class 0) contributes. Contract: 0 <= target < K (out-of-range targets are
    # silently treated as contributing lse only).
    row = jax.lax.broadcasted_iota(jnp.int32, (k, cols_per_core), 0)
    m = jnp.max(logits, axis=0, keepdims=True)                                 # (1, C)
    lse = m + jnp.log(jnp.sum(jnp.exp(logits - m), axis=0, keepdims=True))     # (1, C)
    picked = jnp.sum(jnp.where(row == target, logits, 0.0), axis=0, keepdims=True)
    ce = jnp.where(valid, lse - picked, 0.0)                                   # (1, C)

    # ---- localization: SmoothL1 (beta=1) summed over coords, only rows with class >= 1 ----
    diff = regblk[0:4, :] - regblk[4:8, :]                                     # (4, C)
    ad = jnp.abs(diff)
    smooth = jnp.where(ad < 1.0, 0.5 * ad * ad, ad - 0.5)                      # (4, C)
    reg_mask = jnp.logical_and(valid, target >= 1)                             # (1, C)
    reg = jnp.where(reg_mask, jnp.sum(smooth, axis=0, keepdims=True), 0.0)     # (1, C)
    # masked sum is identically 0 when no foreground ROI exists, matching the PyTorch
    # `if reg_mask.any(): ... else: l_loc = 0.0` branch (Nreg is clamped >=1 in the wrapper).

    per_lane = inv_ncls * ce + lam_over_nreg * reg                             # (1, C)
    total = jnp.sum(per_lane, axis=1, keepdims=True)                           # (1, 1)
    out_ref[...] = jnp.broadcast_to(total, out_ref.shape)                      # lane-dense store


def multi_task_loss(cls_logits, cls_target, reg_prediction, reg_target,
                    lam=1.0, Ncls=1, Nreg=1, *, num_cores=None):
    """Scalar multi-task loss: (1/Ncls) * sum CE + lam * (1/Nreg) * sum masked SmoothL1."""
    n, k = cls_logits.shape

    # 2-TC split only pays off on v7x at large N; on 1-TC chips (v5e/v6e) it is pure overhead.
    if num_cores is None:
        num_cores = 2 if n >= 8192 else 1

    cols = ((pl.cdiv(n, num_cores) + 127) // 128) * 128     # per-core lane width, 128-aligned
    n_pad = num_cores * cols
    pad = n_pad - n

    # ---- lane-dense relayout: ROIs on the lane axis (layout plumbing, native dtype kept) ----
    logits_t = jnp.pad(cls_logits, ((0, pad), (0, 0))).T                        # (K, n_pad)
    reg_blk = jnp.pad(jnp.concatenate([reg_prediction, reg_target], axis=1),
                      ((0, pad), (0, 0))).T                                     # (8, n_pad)
    target_row = jnp.pad(cls_target.astype(jnp.int32), (0, pad)).reshape(1, n_pad)

    # precombined runtime scalars in SMEM -> changing lam / Ncls / Nreg never recompiles;
    # Nreg clamped to >=1 so the empty-foreground case stays 0.0 (not inf * 0 = NaN).
    scales = jnp.array([1.0 / Ncls, lam / max(Nreg, 1)], dtype=jnp.float32)

    kernel = functools.partial(_multitask_loss_kernel, n_valid=n, cols_per_core=cols)

    bytes_in = (logits_t.size * logits_t.dtype.itemsize
                + target_row.size * target_row.dtype.itemsize
                + reg_blk.size * reg_blk.dtype.itemsize)
    cost = pl.CostEstimate(
        flops=int(10 * n_pad * k + 24 * n_pad),
        transcendentals=int(n_pad * (k + 1)),
        bytes_accessed=int(bytes_in + scales.size * 4 + num_cores * 128 * 4),
    )

    out = pl.pallas_call(
        kernel,
        out_shape=jax.ShapeDtypeStruct((1, num_cores * 128), jnp.float32),
        grid_spec=pltpu.PrefetchScalarGridSpec(
            num_scalar_prefetch=0,
            grid=(num_cores,),
            in_specs=[
                pl.BlockSpec(memory_space=pltpu.MemorySpace.SMEM),   # scales
                pl.BlockSpec((k, cols), lambda c: (0, c)),           # logits (K, N)
                pl.BlockSpec((1, cols), lambda c: (0, c)),           # targets (1, N)
                pl.BlockSpec((8, cols), lambda c: (0, c)),           # reg pred|target (8, N)
            ],
            out_specs=pl.BlockSpec((1, 128), lambda c: (0, c)),      # per-core partial slab
        ),
        compiler_params=pltpu.CompilerParams(
            dimension_semantics=("parallel",),
        ),
        cost_estimate=cost,
    )(scales, logits_t, target_row, reg_blk)

    # combine per-core partial sums (lane 0 of each core's 128-wide slab)
    return out.reshape(num_cores, 128)[:, 0].sum()


if __name__ == "__main__":
    key = jax.random.PRNGKey(0)
    k1, k2, k3, k4 = jax.random.split(key, 4)

    # small but realistic ROI mini-batch: 300 sampled ROIs, 5 classes (class 0 = background)
    N, K = 300, 5
    lam = 1.0
    Ncls, Nreg = N, max(1, N // 4)

    cls_logits = jax.random.normal(k1, (N, K), dtype=jnp.float32)
    cls_target = jax.random.randint(k2, (N,), 0, K, dtype=jnp.int32)
    reg_prediction = jax.random.normal(k3, (N, 4), dtype=jnp.float32)
    reg_target = jax.random.normal(k4, (N, 4), dtype=jnp.float32)

    loss = multi_task_loss(cls_logits, cls_target, reg_prediction, reg_target,
                           lam=lam, Ncls=Ncls, Nreg=Nreg)
    jax.block_until_ready(loss)

    # pure-JAX reference of the PyTorch semantics
    logp = jax.nn.log_softmax(cls_logits, axis=-1)
    ce_ref = -jnp.sum(jnp.take_along_axis(logp, cls_target[:, None], axis=1))
    diff = reg_prediction - reg_target
    ad = jnp.abs(diff)
    sl1 = jnp.where(ad < 1.0, 0.5 * ad * ad, ad - 0.5)
    mask = (cls_target >= 1)[:, None]
    reg_ref = jnp.sum(jnp.where(mask, sl1, 0.0))
    ref = (1.0 / Ncls) * ce_ref + lam * (1.0 / Nreg) * reg_ref
    assert jnp.allclose(loss, ref, rtol=1e-4, atol=1e-5), (loss, ref)

    print("KERNEL_OK")
</pallas_src>

<mosaic_0001>
module attributes {stable_mosaic.version = 11 : i64} {
  func.func @_multitask_loss_kernel(%arg0: i32, %arg1: memref<2xf32, #tpu.memory_space<smem>>, %arg2: memref<5x384xf32, #tpu.memory_space<vmem>>, %arg3: memref<1x384xi32, #tpu.memory_space<vmem>>, %arg4: memref<8x384xf32, #tpu.memory_space<vmem>>, %arg5: memref<1x128xf32, #tpu.memory_space<vmem>>) attributes {dimension_semantics = [#tpu.dimension_semantics<parallel>], iteration_bounds = array<i64: 1>, scalar_prefetch = 0 : i64, scratch_operands = 0 : i64, tpu.core_type = #tpu.core_type<tc>, window_params = [{transform_indices = @transform_0, window_bounds = array<i64: 2>}, {transform_indices = @transform_1, window_bounds = array<i64: 5, 384>}, {transform_indices = @transform_2, window_bounds = array<i64: 1, 384>}, {transform_indices = @transform_3, window_bounds = array<i64: 8, 384>}, {transform_indices = @transform_4, window_bounds = array<i64: 1, 128>}]} {
    %c0 = arith.constant 0 : index
    %c0_0 = arith.constant 0 : index
    %0 = vector.load %arg2[%c0, %c0_0] : memref<5x384xf32, #tpu.memory_space<vmem>>, vector<5x384xf32>
    %c0_1 = arith.constant 0 : index
    %c0_2 = arith.constant 0 : index
    %1 = vector.load %arg3[%c0_1, %c0_2] : memref<1x384xi32, #tpu.memory_space<vmem>>, vector<1x384xi32>
    %c0_3 = arith.constant 0 : index
    %c0_4 = arith.constant 0 : index
    %2 = vector.load %arg4[%c0_3, %c0_4] : memref<8x384xf32, #tpu.memory_space<vmem>>, vector<8x384xf32>
    %c0_5 = arith.constant 0 : index
    %3 = memref.load %arg1[%c0_5] : memref<2xf32, #tpu.memory_space<smem>>
    %c1 = arith.constant 1 : index
    %4 = memref.load %arg1[%c1] : memref<2xf32, #tpu.memory_space<smem>>
    %5 = tpu.iota {dimensions = array<i32: 1>} : vector<1x384xi32>
    %c384_i32 = arith.constant 384 : i32
    %6 = arith.muli %arg0, %c384_i32 : i32
    %7 = vector.broadcast %6 : i32 to vector<1x384xi32>
    %8 = arith.addi %7, %5 : vector<1x384xi32>
    %c300_i32 = arith.constant 300 : i32
    %9 = vector.broadcast %c300_i32 : i32 to vector<1x384xi32>
    %10 = arith.cmpi slt, %8, %9 : vector<1x384xi32>
    %11 = tpu.iota {dimensions = array<i32: 0>} : vector<5x384xi32>
    %cst = arith.constant dense<0xFF800000> : vector<384xf32>
    %12 = vector.multi_reduction <maximumf>, %0, %cst [0] : vector<5x384xf32> to vector<384xf32>
    %13 = vector.shape_cast %12 : vector<384xf32> to vector<1x384xf32>
    %14 = vector.broadcast %13 : vector<1x384xf32> to vector<5x384xf32>
    %15 = arith.subf %0, %14 : vector<5x384xf32>
    %16 = math.exp %15 : vector<5x384xf32>
    %cst_6 = arith.constant dense<0.000000e+00> : vector<384xf32>
    %17 = vector.multi_reduction <add>, %16, %cst_6 [0] : vector<5x384xf32> to vector<384xf32>
    %18 = vector.shape_cast %17 : vector<384xf32> to vector<1x384xf32>
    %19 = math.log %18 : vector<1x384xf32>
    %20 = arith.addf %13, %19 : vector<1x384xf32>
    %21 = vector.broadcast %1 : vector<1x384xi32> to vector<5x384xi32>
    %22 = arith.cmpi eq, %11, %21 : vector<5x384xi32>
    %cst_7 = arith.constant 0.000000e+00 : f32
    %23 = vector.broadcast %cst_7 : f32 to vector<5x384xf32>
    %24 = arith.select %22, %0, %23 : vector<5x384xi1>, vector<5x384xf32>
    %cst_8 = arith.constant dense<0.000000e+00> : vector<384xf32>
    %25 = vector.multi_reduction <add>, %24, %cst_8 [0] : vector<5x384xf32> to vector<384xf32>
    %26 = vector.shape_cast %25 : vector<384xf32> to vector<1x384xf32>
    %27 = arith.subf %20, %26 : vector<1x384xf32>
    %cst_9 = arith.constant 0.000000e+00 : f32
    %28 = vector.broadcast %cst_9 : f32 to vector<1x384xf32>
    %29 = arith.select %10, %27, %28 : vector<1x384xi1>, vector<1x384xf32>
    %30 = vector.extract_strided_slice %2 {offsets = [0, 0], sizes = [4, 384], strides = [1, 1]} : vector<8x384xf32> to vector<4x384xf32>
    %31 = vector.extract_strided_slice %2 {offsets = [4, 0], sizes = [4, 384], strides = [1, 1]} : vector<8x384xf32> to vector<4x384xf32>
    %32 = arith.subf %30, %31 : vector<4x384xf32>
    %33 = math.absf %32 : vector<4x384xf32>
    %cst_10 = arith.constant 1.000000e+00 : f32
    %34 = vector.broadcast %cst_10 : f32 to vector<4x384xf32>
    %35 = arith.cmpf olt, %33, %34 : vector<4x384xf32>
    %cst_11 = arith.constant 5.000000e-01 : f32
    %36 = vector.broadcast %cst_11 : f32 to vector<4x384xf32>
    %37 = arith.mulf %36, %33 : vector<4x384xf32>
    %38 = arith.mulf %37, %33 : vector<4x384xf32>
    %cst_12 = arith.constant 5.000000e-01 : f32
    %39 = vector.broadcast %cst_12 : f32 to vector<4x384xf32>
    %40 = arith.subf %33, %39 : vector<4x384xf32>
    %41 = arith.select %35, %38, %40 : vector<4x384xi1>, vector<4x384xf32>
    %c1_i32 = arith.constant 1 : i32
    %42 = vector.broadcast %c1_i32 : i32 to vector<1x384xi32>
    %43 = arith.cmpi sge, %1, %42 : vector<1x384xi32>
    %44 = arith.andi %10, %43 : vector<1x384xi1>
    %cst_13 = arith.constant dense<0.000000e+00> : vector<384xf32>
    %45 = vector.multi_reduction <add>, %41, %cst_13 [0] : vector<4x384xf32> to vector<384xf32>
    %46 = vector.shape_cast %45 : vector<384xf32> to vector<1x384xf32>
    %cst_14 = arith.constant 0.000000e+00 : f32
    %47 = vector.broadcast %cst_14 : f32 to vector<1x384xf32>
    %48 = arith.select %44, %46, %47 : vector<1x384xi1>, vector<1x384xf32>
    %49 = vector.broadcast %3 : f32 to vector<1x384xf32>
    %50 = arith.mulf %49, %29 : vector<1x384xf32>
    %51 = vector.broadcast %4 : f32 to vector<1x384xf32>
    %52 = arith.mulf %51, %48 : vector<1x384xf32>
    %53 = arith.addf %50, %52 : vector<1x384xf32>
    %cst_15 = arith.constant dense<0.000000e+00> : vector<1xf32>
    %54 = vector.multi_reduction <add>, %53, %cst_15 [1] : vector<1x384xf32> to vector<1xf32>
    %55 = vector.shape_cast %54 : vector<1xf32> to vector<1x1xf32>
    %56 = vector.shape_cast %55 : vector<1x1xf32> to vector<1x1xf32>
    %57 = vector.broadcast %56 : vector<1x1xf32> to vector<1x128xf32>
    %c0_16 = arith.constant 0 : index
    %c0_17 = arith.constant 0 : index
    %58 = vector.load %arg5[%c0_16, %c0_17] : memref<1x128xf32, #tpu.memory_space<vmem>>, vector<1x128xf32>
    tpu.vector_store %arg5[%c0_16, %c0_17], %57 {strides = array<i32>} : memref<1x128xf32, #tpu.memory_space<vmem>>, vector<1x128xf32>,
    return
  }
  func.func @transform_0(%arg0: i32) -> i32 {
    %c0_i32 = arith.constant 0 : i32
    %c0_i32_0 = arith.constant 0 : i32
    return %c0_i32 : i32
  }
  func.func @transform_1(%arg0: i32) -> (i32, i32) {
    %c0_i32 = arith.constant 0 : i32
    %c0_i32_0 = arith.constant 0 : i32
    return %c0_i32, %arg0 : i32, i32
  }
  func.func @transform_2(%arg0: i32) -> (i32, i32) {
    %c0_i32 = arith.constant 0 : i32
    %c0_i32_0 = arith.constant 0 : i32
    return %c0_i32, %arg0 : i32, i32
  }
  func.func @transform_3(%arg0: i32) -> (i32, i32) {
    %c0_i32 = arith.constant 0 : i32
    %c0_i32_0 = arith.constant 0 : i32
    return %c0_i32, %arg0 : i32, i32
  }
  func.func @transform_4(%arg0: i32) -> (i32, i32) {
    %c0_i32 = arith.constant 0 : i32
    %c0_i32_0 = arith.constant 0 : i32
    return %c0_i32, %arg0 : i32, i32
  }
}

</mosaic_0001>

<llo_original>
// kernel: tpu_custom_call.1
$region0: #{tpu_custom_call.1}
  #allocation0 [shape = 'u32[]', space=smem, size = 0x4, offset = 0x4, fixed_abs, tag = 'smem constant byte address 0x4 - core index']
  #allocation1 [shape = 'u32[72,128]{1,0:T(1,128)}', space=vmem, size = 0x9000, scoped, tag = 'internal scratch']
  %s0 = inlined_call_operand.hbm [shape: f32[2], index: 0, kind: input, shape index: {}]
  %s1 = inlined_call_operand.hbm [shape: f32[5,384], index: 1, kind: input, shape index: {}]
  %s2 = inlined_call_operand.hbm [shape: s32[1,384], index: 2, kind: input, shape index: {}]
  %s3 = inlined_call_operand.hbm [shape: f32[8,384], index: 3, kind: input, shape index: {}]
  %s4 = inlined_call_operand.hbm [shape: f32[1,128], index: 4, kind: output, shape index: {}]
  %s5 = sld [smem:[#allocation0]]
  $region42: #{tpu_custom_call.1} parent=0
    _
  %s7 = ssub.s32 1, %s5
  %s8 = scalar_select 0, %s7, %s5
  $region1: #{tpu_custom_call.1} parent=0
    #allocation2 [shape = 'u8[512]{0}', space=smem, size = 0x200, scoped, tag = 'input window, operand 0, single buffered']
    #allocation3 [shape = 's32[1]{0}', space=sflag, size = 0x4, scoped, tag = 'scoped memory for tpu_custom_call.1']
    #allocation4 [shape = 's32[1]{0}', space=sflag, size = 0x4, scoped, tag = 'scoped memory for tpu_custom_call.1']
    #allocation5 [shape = 's32[1]{0}', space=sflag, size = 0x4, scoped, tag = 'scoped memory for tpu_custom_call.1']
    #allocation6 [shape = 'u8[12288]{0}', space=vmem, size = 0x3000, scoped, tag = 'input window, operand 1, single buffered']
    #allocation7 [shape = 'u8[1536]{0}', space=vmem, size = 0x800, scoped, tag = 'input window, operand 2, single buffered']
    #allocation8 [shape = 's32[1]{0}', space=sflag, size = 0x4, scoped, tag = 'scoped memory for tpu_custom_call.1']
    #allocation9 [shape = 'u8[12288]{0}', space=vmem, size = 0x3000, scoped, tag = 'input window, operand 3, single buffered']
    #allocation10 [shape = 'u8[512]{0}', space=vmem, size = 0x400, scoped, tag = 'output window, operand 0, single buffered']
    %9 = vsyncpa [#allocation5], 0
    %10 = vsyncpa [#allocation3], 0
    %11 = vsyncpa [#allocation8], 0
    %12 = vsyncpa [#allocation4], 0
    // Predicated region
    $region2: #{tpu_custom_call.1} parent=1 // pred_check
      _
    $region3: #{tpu_custom_call.1} parent=1 // pred_check_branch
      %14 = sbr.rel (0) target = $region5
    $region4: #{tpu_custom_call.1} parent=1 // pred_region
      %16 = vsyncadd [#allocation5], 0
      %s18 = sshll.u32 %s0, 4
      %s19 = int_to_ptr.hbm [resolvable:$true] %s18
      %21 = dma.hbm_to_smem %s19, 16, [#allocation2], [#allocation5]
    $region5: #{tpu_custom_call.1} parent=1 // pred_fallthru
      _
    // Predicated region
    $region6: #{tpu_custom_call.1} parent=1 // pred_check
      _
    $region7: #{tpu_custom_call.1} parent=1 // pred_check_branch
      %23 = sbr.rel (0) target = $region9
    $region8: #{tpu_custom_call.1} parent=1 // pred_region
      %25 = vsyncadd [#allocation3], 0
      %s27 = sshll.u32 %s1, 4
      %s28 = int_to_ptr.hbm [resolvable:$true] %s27
      %s29 = sshll.u32 [#allocation6], 4
      %s30 = int_to_ptr.vmem [resolvable:$true] %s29
      %32 = dma.hbm_to_vmem [thread:$0]  %s28, 384, %s30, [#allocation3]
    $region9: #{tpu_custom_call.1} parent=1 // pred_fallthru
      _
    // Predicated region
    $region10: #{tpu_custom_call.1} parent=1 // pred_check
      _
    $region11: #{tpu_custom_call.1} parent=1 // pred_check_branch
      %34 = sbr.rel (0) target = $region13
    $region12: #{tpu_custom_call.1} parent=1 // pred_region
      %36 = vsyncadd [#allocation8], 0
      %s38 = sshll.u32 %s2, 4
      %s39 = int_to_ptr.hbm [resolvable:$true] %s38
      %s40 = sshll.u32 [#allocation7], 4
      %s41 = int_to_ptr.vmem [resolvable:$true] %s40
      %43 = dma.hbm_to_vmem [thread:$0]  %s39, 48, %s41, [#allocation8]
    $region13: #{tpu_custom_call.1} parent=1 // pred_fallthru
      _
    // Predicated region
    $region14: #{tpu_custom_call.1} parent=1 // pred_check
      _
    $region15: #{tpu_custom_call.1} parent=1 // pred_check_branch
      %45 = sbr.rel (0) target = $region17
    $region16: #{tpu_custom_call.1} parent=1 // pred_region
      %47 = vsyncadd [#allocation8], 0
      %s49 = sshll.u32 %s3, 4
      %s50 = int_to_ptr.hbm [resolvable:$true] %s49
      %s51 = sshll.u32 [#allocation9], 4
      %s52 = int_to_ptr.vmem [resolvable:$true] %s51
      %54 = dma.hbm_to_vmem [thread:$0]  %s50, 384, %s52, [#allocation8]
    $region17: #{tpu_custom_call.1} parent=1 // pred_fallthru
      _
    // Predicated region
    $region18: #{tpu_custom_call.1} parent=1 // pred_check
      _
    $region19: #{tpu_custom_call.1} parent=1 // pred_check_branch
      %56 = sbr.rel (0) target = $region21
    $region20: #{tpu_custom_call.1} parent=1 // pred_region
      %58 = dma.done [#allocation5], 16
    $region21: #{tpu_custom_call.1} parent=1 // pred_fallthru
      _
    // Predicated region
    $region22: #{tpu_custom_call.1} parent=1 // pred_check
      _
    $region23: #{tpu_custom_call.1} parent=1 // pred_check_branch
      %60 = sbr.rel (0) target = $region25
    $region24: #{tpu_custom_call.1} parent=1 // pred_region
      %62 = dma.done [#allocation3], 384
    $region25: #{tpu_custom_call.1} parent=1 // pred_fallthru
      _
    // Predicated region
    $region26: #{tpu_custom_call.1} parent=1 // pred_check
      _
    $region27: #{tpu_custom_call.1} parent=1 // pred_check_branch
      %64 = sbr.rel (0) target = $region29
    $region28: #{tpu_custom_call.1} parent=1 // pred_region
      %66 = dma.done [#allocation8], 48
    $region29: #{tpu_custom_call.1} parent=1 // pred_fallthru
      _
    // Predicated region
    $region30: #{tpu_custom_call.1} parent=1 // pred_check
      _
    $region31: #{tpu_custom_call.1} parent=1 // pred_check_branch
      %68 = sbr.rel (0) target = $region33
    $region32: #{tpu_custom_call.1} parent=1 // pred_region
      %70 = dma.done [#allocation8], 384
    $region33: #{tpu_custom_call.1} parent=1 // pred_fallthru
      _
    %71 = sfence
    %v72 = vld [vmem:[#allocation6] sm:$0x1f]
    %v73 = vld [vmem:[#allocation6 + $0x8] sm:$0x1f]
    %v74 = vld [vmem:[#allocation6 + $0x10] sm:$0x1f]
    %v75 = vld [vmem:[#allocation7] sm:$0x7]
    %v76 = vld [vmem:[#allocation9] sm:$0xff]
    %v77 = vld [vmem:[#allocation9 + $0x8] sm:$0xff]
    %v78 = vld [vmem:[#allocation9 + $0x10] sm:$0xff]
    %s79 = sld [smem:[#allocation2]]
    %s80 = sld [smem:[#allocation2 + $0x1]]
    %v81 = vlaneseq
    %v82 = vand.u32 %v81, 127
    %v83 = vadd.s32 %v82, 128
    %v84 = vadd.s32 %v82, 256
    %s85 = smul.u32 0, 384
    %v86 = vstv %s85
    %v87 = vadd.s32 %v86, %v82
    %v88 = vadd.s32 %v86, %v83
    %v89 = vadd.s32 %v86, %v84
    %vm90 = vcmp.lt.s32.totalorder %v87, 300
    %vm91 = vcmp.lt.s32.totalorder %v88, 300
    %vm92 = vcmp.lt.s32.totalorder %v89, 300
    %v93 = vlaneseq
    %v94 = vshrl.u32 %v93, 7
    %vm95 = vcmask 1044480
    %v96 = vsel %vm95, %v72, -inf
    %v97 = vrot.slane %v96, 4
    %v98 = vmax.f32 %v96, %v97
    %v99 = vrot.slane %v98, 2
    %v100 = vmax.f32 %v98, %v99
    %v101 = vrot.slane %v100, 1
    %v102 = vmax.f32 %v100, %v101
    %v103 = vsel %vm95, %v73, -inf
    %v104 = vrot.slane %v103, 4
    %v105 = vmax.f32 %v103, %v104
    %v106 = vrot.slane %v105, 2
    %v107 = vmax.f32 %v105, %v106
    %v108 = vrot.slane %v107, 1
    %v109 = vmax.f32 %v107, %v108
    %v110 = vsel %vm95, %v74, -inf
    %v111 = vrot.slane %v110, 4
    %v112 = vmax.f32 %v110, %v111
    %v113 = vrot.slane %v112, 2
    %v114 = vmax.f32 %v112, %v113
    %v115 = vrot.slane %v114, 1
    %v116 = vmax.f32 %v114, %v115
    %v117 = vsub.f32 %v72, %v102
    %v118 = vsub.f32 %v73, %v109
    %v119 = vsub.f32 %v74, %v116
    %v120 = vmul.f32 %v117, 1.442695
    %v121 = vpow.pop %v120
    %v122 = vmul.f32 %v118, 1.442695
    %v123 = vpow.pop %v122
    %v124 = vmul.f32 %v119, 1.442695
    %v125 = vpow.pop %v124
    %v126 = vsel %vm95, %v121, 0.0
    %v127 = vrot.slane %v126, 4
    %v128 = vadd.f32 %v126, %v127
    %v129 = vrot.slane %v128, 2
    %v130 = vadd.f32 %v128, %v129
    %v131 = vrot.slane %v130, 1
    %v132 = vadd.f32 %v130, %v131
    %v133 = vsel %vm95, %v123, 0.0
    %v134 = vrot.slane %v133, 4
    %v135 = vadd.f32 %v133, %v134
    %v136 = vrot.slane %v135, 2
    %v137 = vadd.f32 %v135, %v136
    %v138 = vrot.slane %v137, 1
    %v139 = vadd.f32 %v137, %v138
    %v140 = vsel %vm95, %v125, 0.0
    %v141 = vrot.slane %v140, 4
    %v142 = vadd.f32 %v140, %v141
    %v143 = vrot.slane %v142, 2
    %v144 = vadd.f32 %v142, %v143
    %v145 = vrot.slane %v144, 1
    %v146 = vadd.f32 %v144, %v145
    %v147 = vlog2.pop %v132
    %v148 = vmul.f32 %v147, 0.6931472
    %v149 = vlog2.pop %v139
    %v150 = vmul.f32 %v149, 0.6931472
    %v151 = vlog2.pop %v146
    %v152 = vmul.f32 %v151, 0.6931472
    %v153 = vadd.f32 %v102, %v148
    %v154 = vadd.f32 %v109, %v150
    %v155 = vadd.f32 %v116, %v152
    %v156 = vperm.slane %v75, 0
    %v157 = vperm.slane %v75, 1
    %v158 = vperm.slane %v75, 2
    %vm159 = vcmp.eq.s32.totalorder %v94, %v156
    %vm160 = vcmp.eq.s32.totalorder %v94, %v157
    %vm161 = vcmp.eq.s32.totalorder %v94, %v158
    %v162 = vsel %vm159, %v72, 0.0
    %v163 = vsel %vm160, %v73, 0.0
    %v164 = vsel %vm161, %v74, 0.0
    %v165 = vsel %vm95, %v162, 0.0
    %v166 = vrot.slane %v165, 4
    %v167 = vadd.f32 %v165, %v166
    %v168 = vrot.slane %v167, 2
    %v169 = vadd.f32 %v167, %v168
    %v170 = vrot.slane %v169, 1
    %v171 = vadd.f32 %v169, %v170
    %v172 = vsel %vm95, %v163, 0.0
    %v173 = vrot.slane %v172, 4
    %v174 = vadd.f32 %v172, %v173
    %v175 = vrot.slane %v174, 2
    %v176 = vadd.f32 %v174, %v175
    %v177 = vrot.slane %v176, 1
    %v178 = vadd.f32 %v176, %v177
    %v179 = vsel %vm95, %v164, 0.0
    %v180 = vrot.slane %v179, 4
    %v181 = vadd.f32 %v179, %v180
    %v182 = vrot.slane %v181, 2
    %v183 = vadd.f32 %v181, %v182
    %v184 = vrot.slane %v183, 1
    %v185 = vadd.f32 %v183, %v184
    %v186 = vsub.f32 %v153, %v171
    %v187 = vsub.f32 %v154, %v178
    %v188 = vsub.f32 %v155, %v185
    %v189 = vsel %vm90, %v186, 0.0
    %v190 = vsel %vm91, %v187, 0.0
    %v191 = vsel %vm92, %v188, 0.0
    %v195 = vrot.slane %v76, 4
    %v196 = vrot.slane %v77, 4
    %v197 = vrot.slane %v78, 4
    %v201 = vsub.f32 %v76, %v195
    %v202 = vsub.f32 %v77, %v196
    %v203 = vsub.f32 %v78, %v197
    %v204 = vand.u32 2147483647, %v201
    %v205 = vand.u32 2147483647, %v202
    %v206 = vand.u32 2147483647, %v203
    %vm207 = vcmp.lt.f32.partialorder %v204, 1.0
    %vm208 = vcmp.lt.f32.partialorder %v205, 1.0
    %vm209 = vcmp.lt.f32.partialorder %v206, 1.0
    %v210 = vmul.f32 %v204, 0.5
    %v211 = vmul.f32 %v205, 0.5
    %v212 = vmul.f32 %v206, 0.5
    %v213 = vmul.f32 %v210, %v204
    %v214 = vmul.f32 %v211, %v205
    %v215 = vmul.f32 %v212, %v206
    %v216 = vsub.f32 %v204, 0.5
    %v217 = vsub.f32 %v205, 0.5
    %v218 = vsub.f32 %v206, 0.5
    %v219 = vsel %vm207, %v213, %v216
    %v220 = vsel %vm208, %v214, %v217
    %v221 = vsel %vm209, %v215, %v218
    %vm222 = vcmp.ge.s32.totalorder %v75, 1
    %v223 = vsel %vm222, 1, 0
    %v224 = vperm.slane %v223, 0
    %v225 = vperm.slane %v223, 1
    %v226 = vperm.slane %v223, 2
    %vm227 = vcmp.ne.s32.totalorder %v224, 0
    %vm228 = vcmp.ne.s32.totalorder %v225, 0
    %vm229 = vcmp.ne.s32.totalorder %v226, 0
    %vm230 = vmand %vm90, %vm227
    %vm231 = vmand %vm91, %vm228
    %vm232 = vmand %vm92, %vm229
    %vm233 = vcmask 1043456
    %v234 = vsel %vm233, %v219, 0.0
    %v235 = vrot.slane %v234, 4
    %v236 = vadd.f32 %v234, %v235
    %v237 = vrot.slane %v236, 2
    %v238 = vadd.f32 %v236, %v237
    %v239 = vrot.slane %v238, 1
    %v240 = vadd.f32 %v238, %v239
    %v241 = vsel %vm233, %v220, 0.0
    %v242 = vrot.slane %v241, 4
    %v243 = vadd.f32 %v241, %v242
    %v244 = vrot.slane %v243, 2
    %v245 = vadd.f32 %v243, %v244
    %v246 = vrot.slane %v245, 1
    %v247 = vadd.f32 %v245, %v246
    %v248 = vsel %vm233, %v221, 0.0
    %v249 = vrot.slane %v248, 4
    %v250 = vadd.f32 %v248, %v249
    %v251 = vrot.slane %v250, 2
    %v252 = vadd.f32 %v250, %v251
    %v253 = vrot.slane %v252, 1
    %v254 = vadd.f32 %v252, %v253
    %v255 = vsel %vm230, %v240, 0.0
    %v256 = vsel %vm231, %v247, 0.0
    %v257 = vsel %vm232, %v254, 0.0
    %v258 = vstv %s79
    %v259 = vmul.f32 %v258, %v189
    %v260 = vmul.f32 %v258, %v190
    %v261 = vmul.f32 %v258, %v191
    %v262 = vstv %s80
    %v263 = vmul.f32 %v262, %v255
    %v264 = vmul.f32 %v262, %v256
    %v265 = vmul.f32 %v262, %v257
    %v266 = vadd.f32 %v259, %v263
    %v267 = vadd.f32 %v260, %v264
    %v268 = vadd.f32 %v261, %v265
    %vm269 = vcmask 1040384
    %v270 = vsel %vm269, %v266, 0.0
    %v271 = vsel %vm269, %v267, 0.0
    %v272 = vadd.f32 %v270, %v271
    %v273 = vsel %vm269, %v268, 0.0
    %v274 = vadd.f32 %v272, %v273
    %275 = vadd.xlane.f32.xlu0 %v274
    %v276 = vpop.xlane.xlu0 %275
    %277 = vst [vmem:[#allocation10] sm:$0x1] %v276
    // Predicated region
    $region34: #{tpu_custom_call.1} parent=1 // pred_check
      _
    $region35: #{tpu_custom_call.1} parent=1 // pred_check_branch
      %279 = sbr.rel (0) target = $region37
    $region36: #{tpu_custom_call.1} parent=1 // pred_region
      %281 = vsyncadd [#allocation4], 0
      %s283 = sshll.u32 [#allocation10], 4
      %s284 = int_to_ptr.vmem [resolvable:$true] %s283
      %s285 = sshll.u32 %s4, 4
      %s286 = int_to_ptr.hbm [resolvable:$true] %s285
      %288 = dma.vmem_to_hbm [thread:$0]  %s284, 16, %s286, [#allocation4]
    $region37: #{tpu_custom_call.1} parent=1 // pred_fallthru
      _
    // Predicated region
    $region38: #{tpu_custom_call.1} parent=1 // pred_check
      _
    $region39: #{tpu_custom_call.1} parent=1 // pred_check_branch
      %290 = sbr.rel (0) target = $region41
    $region40: #{tpu_custom_call.1} parent=1 // pred_region
      %292 = dma.done [#allocation4], 16
    $region41: #{tpu_custom_call.1} parent=1 // pred_fallthru
      _
    %293 = vsyncpa [#allocation3], 1
    %294 = vsyncpa [#allocation8], 1
    %295 = vsyncpa [#allocation4], 1
    %296 = vsyncpa [#allocation5], 1

</llo_original>
